<compile_context>
chip_gen: v5e
topology: v5e:2x2
jax: 0.10.0
libtpu: 0.0.40
codegen_flags: <defaults>
</compile_context>

<pallas_src>
import jax
import jax.numpy as jnp
from jax.experimental import pallas as pl
from jax.experimental.pallas import tpu as pltpu


_MAX_INFLIGHT_DMAS = 4          # a few concurrent DMAs saturate HBM for memcpy
_MIN_CHUNK_BYTES = 1 << 20      # don't split below ~1 MiB per DMA


def _row_chunks(n_rows: int, row_bytes: int, itemsize: int):
    """Static (start, n_rows) chunks along the leading dim, sublane-aligned."""
    total_bytes = n_rows * row_bytes
    n = max(1, min(_MAX_INFLIGHT_DMAS, total_bytes // _MIN_CHUNK_BYTES))
    # Native packed sublane tile: 8 rows @ 4B, 16 @ 2B (bf16/fp16), 32 @ 1B.
    sub = 8 * max(1, 4 // max(1, itemsize))
    per = -(-n_rows // n)              # ceil(n_rows / n)
    per = -(-per // sub) * sub         # round up to a sublane multiple
    chunks = []
    start = 0
    while start < n_rows:
        size = min(per, n_rows - start)
        chunks.append((start, size))
        start += size
    return tuple(chunks)


def _make_dma_copy_kernel(chunks):
    """Kernel issuing one HBM->HBM DMA per static chunk, all in flight."""
    def kernel(x_hbm, o_hbm, sems):
        copies = []
        for i, (start, size) in enumerate(chunks):
            cp = pltpu.make_async_copy(
                x_hbm.at[pl.ds(start, size)],
                o_hbm.at[pl.ds(start, size)],
                sems.at[i],
            )
            cp.start()
            copies.append(cp)
        for cp in copies:
            cp.wait()
    return kernel, len(chunks)


def identity_pallas_copy(x: jax.Array) -> jax.Array:
    """Identity that materializes a fresh output buffer via HBM->HBM DMA."""
    if x.size == 0:
        return x
    orig_shape = x.shape
    # 2D view: chunk along the leading (most-major) dim — always a clean,
    # contiguous slice in HBM regardless of dtype packing or lane width.
    x2d = x.reshape(-1, x.shape[-1]) if x.ndim >= 2 else x.reshape(1, -1)
    R, C = x2d.shape
    itemsize = x2d.dtype.itemsize
    chunks = _row_chunks(R, C * itemsize, itemsize)
    kernel, n_sems = _make_dma_copy_kernel(chunks)

    out2d = pl.pallas_call(
        kernel,
        out_shape=jax.ShapeDtypeStruct((R, C), x2d.dtype),
        in_specs=[pl.BlockSpec(memory_space=pl.ANY)],
        out_specs=pl.BlockSpec(memory_space=pl.ANY),
        scratch_shapes=[pltpu.SemaphoreType.DMA((n_sems,))],
    )(x2d)
    return out2d.reshape(orig_shape)


def identity_pallas(x: jax.Array, *, materialize: bool = False) -> jax.Array:
    """Identity.forward: return x unchanged (same shape, dtype, values).

    Default is the zero-cost bypass (review's top recommendation).  Pass
    materialize=True only if a distinct output buffer is required.
    """
    if not materialize:
        return x
    return identity_pallas_copy(x)


if __name__ == "__main__":
    key = jax.random.PRNGKey(0)
    k1, k2 = jax.random.split(key)

    # Small NCHW-style input consistent with a typical conv-network tensor.
    x = jax.random.normal(k1, (2, 4, 16, 16), dtype=jnp.float32)

    # Default path: zero-cost bypass (the correct Identity semantics).
    y = jax.block_until_ready(identity_pallas(x))
    assert y.shape == x.shape, f"shape mismatch: {y.shape} vs {x.shape}"
    assert y.dtype == x.dtype, f"dtype mismatch: {y.dtype} vs {x.dtype}"
    assert bool(jnp.array_equal(y, x)), "identity (bypass) output differs from input"

    # Exercise the Pallas HBM->HBM DMA kernel on the module-shaped input.
    y_copy = jax.block_until_ready(identity_pallas(x, materialize=True))
    assert y_copy.shape == x.shape and y_copy.dtype == x.dtype
    assert bool(jnp.array_equal(y_copy, x)), "identity (DMA copy) output differs from input"

    # Larger array -> multiple in-flight DMA chunks (8 MiB f32, 4 chunks).
    x_big = jax.random.normal(k2, (2048, 1024), dtype=jnp.float32)
    y_big = jax.block_until_ready(identity_pallas_copy(x_big))
    assert y_big.shape == x_big.shape and y_big.dtype == x_big.dtype
    assert bool(jnp.array_equal(y_big, x_big)), "identity (DMA copy, large) output differs from input"

    print("KERNEL_OK")
</pallas_src>

<mosaic_0001>
module attributes {stable_mosaic.version = 11 : i64} {
  func.func @kernel(%arg0: memref<128x16xf32, #tpu.memory_space<any>>, %arg1: memref<128x16xf32, #tpu.memory_space<any>>, %arg2: memref<1x!tpu.dma_semaphore, #tpu.memory_space<semaphore_mem>>) attributes {dimension_semantics = [], scalar_prefetch = 0 : i64, scratch_operands = 1 : i64, tpu.core_type = #tpu.core_type<tc>} {
    %c0_i32 = arith.constant 0 : i32
    %c0_i32_0 = arith.constant 0 : i32
    %c0_i32_1 = arith.constant 0 : i32
    %0 = tpu.memref_slice %arg0[%c0_i32_0, %c0_i32_1] : memref<128x16xf32, #tpu.memory_space<any>> -> memref<128x16xf32, #tpu.memory_space<any>>
    %c0_i32_2 = arith.constant 0 : i32
    %c0_i32_3 = arith.constant 0 : i32
    %1 = tpu.memref_slice %arg1[%c0_i32_2, %c0_i32_3] : memref<128x16xf32, #tpu.memory_space<any>> -> memref<128x16xf32, #tpu.memory_space<any>>
    %2 = tpu.memref_slice %arg2[%c0_i32] : memref<1x!tpu.dma_semaphore, #tpu.memory_space<semaphore_mem>> -> memref<1x!tpu.dma_semaphore, #tpu.memory_space<semaphore_mem>>
    %3 = tpu.memref_squeeze %2 : memref<1x!tpu.dma_semaphore, #tpu.memory_space<semaphore_mem>> -> memref<!tpu.dma_semaphore, #tpu.memory_space<semaphore_mem>>
    tpu.enqueue_dma source(%0 : memref<128x16xf32, #tpu.memory_space<any>>) target(%1 : memref<128x16xf32, #tpu.memory_space<any>>) target_semaphore(%3 : memref<!tpu.dma_semaphore, #tpu.memory_space<semaphore_mem>>)
    %c0_i32_4 = arith.constant 0 : i32
    %c0_i32_5 = arith.constant 0 : i32
    %c0_i32_6 = arith.constant 0 : i32
    %4 = tpu.memref_slice %arg0[%c0_i32_5, %c0_i32_6] : memref<128x16xf32, #tpu.memory_space<any>> -> memref<128x16xf32, #tpu.memory_space<any>>
    %c0_i32_7 = arith.constant 0 : i32
    %c0_i32_8 = arith.constant 0 : i32
    %5 = tpu.memref_slice %arg1[%c0_i32_7, %c0_i32_8] : memref<128x16xf32, #tpu.memory_space<any>> -> memref<128x16xf32, #tpu.memory_space<any>>
    %6 = tpu.memref_slice %arg2[%c0_i32_4] : memref<1x!tpu.dma_semaphore, #tpu.memory_space<semaphore_mem>> -> memref<1x!tpu.dma_semaphore, #tpu.memory_space<semaphore_mem>>
    %7 = tpu.memref_squeeze %6 : memref<1x!tpu.dma_semaphore, #tpu.memory_space<semaphore_mem>> -> memref<!tpu.dma_semaphore, #tpu.memory_space<semaphore_mem>>
    tpu.wait_dma2 semaphore(%7 : memref<!tpu.dma_semaphore, #tpu.memory_space<semaphore_mem>>) src(%4 : memref<128x16xf32, #tpu.memory_space<any>>) dst(%5 : memref<128x16xf32, #tpu.memory_space<any>>)
    return
  }
}

</mosaic_0001>

<llo_original>
// kernel: tpu_custom_call.1
$region0: #{tpu_custom_call.1}
  #allocation0 [shape = 'u32[]', space=smem, size = 0x4, offset = 0x4, fixed_abs, tag = 'smem constant byte address 0x4 - core index']
  #allocation1 [shape = 'u32[72,128]{1,0:T(1,128)}', space=vmem, size = 0x9000, scoped, tag = 'internal scratch']
  #allocation2 [shape = 's32[1]{0}', space=sflag, size = 0x4, scoped, tag = 'scratch operand']
  #allocation3 [shape = 's32[]', space=sflag, size = 0x4, offset = 0, fixed_abs, tag = 'sflag constant byte address 0x0 - dummy sync flag']
  %s0 = inlined_call_operand.vmem [shape: f32[128,16], index: 0, kind: input, shape index: {}]
  %s1 = inlined_call_operand.vmem [shape: f32[128,16], index: 1, kind: output, shape index: {}]
  %s2 = sld [smem:[#allocation0]]
  $region21: #{tpu_custom_call.1} parent=0
    _
  %s4 = ssub.s32 1, %s2
  %s5 = scalar_select 0, %s4, %s2
  // Predicated region
  $region2: #{tpu_custom_call.1} parent=0 // pred_check
    _
  $region3: #{tpu_custom_call.1} parent=0 // pred_check_branch
    %7 = sbr.rel (0) target = $region5
  $region4: #{tpu_custom_call.1} parent=0 // pred_region
    loop: start=0, step=1, limit=1
    $region6: #{tpu_custom_call.1} parent=4 // loop_pre_header
      _
    $region7: #{tpu_custom_call.1} parent=4 // loop_header
      %s9 = sphi 0, %s13
      %p10 = scmp.ge.s32.totalorder %s9, 1
      %s14 = sphi %s0, %s0
      %s15 = sphi %s1, %s1
    $region8: #{tpu_custom_call.1} parent=4 // loop_header_branch
      %12 = sbr.rel (%p10) target = $region12
    $region9: #{tpu_custom_call.1} parent=4 // loop_body
      %v16 = vld [vmem:[%s14] sm:$0xff]
      %17 = vst [vmem:[%s15] sm:$0xff] %v16
      %v18 = vld [vmem:[%s14 + $0x8] sm:$0xff]
      %19 = vst [vmem:[%s15 + $0x8] sm:$0xff] %v18
      %v20 = vld [vmem:[%s14 + $0x10] sm:$0xff]
      %21 = vst [vmem:[%s15 + $0x10] sm:$0xff] %v20
      %v22 = vld [vmem:[%s14 + $0x18] sm:$0xff]
      %23 = vst [vmem:[%s15 + $0x18] sm:$0xff] %v22
      %v24 = vld [vmem:[%s14 + $0x20] sm:$0xff]
      %25 = vst [vmem:[%s15 + $0x20] sm:$0xff] %v24
      %v26 = vld [vmem:[%s14 + $0x28] sm:$0xff]
      %27 = vst [vmem:[%s15 + $0x28] sm:$0xff] %v26
      %v28 = vld [vmem:[%s14 + $0x30] sm:$0xff]
      %29 = vst [vmem:[%s15 + $0x30] sm:$0xff] %v28
      %v30 = vld [vmem:[%s14 + $0x38] sm:$0xff]
      %31 = vst [vmem:[%s15 + $0x38] sm:$0xff] %v30
      %v32 = vld [vmem:[%s14 + $0x40] sm:$0xff]
      %33 = vst [vmem:[%s15 + $0x40] sm:$0xff] %v32
      %v34 = vld [vmem:[%s14 + $0x48] sm:$0xff]
      %35 = vst [vmem:[%s15 + $0x48] sm:$0xff] %v34
      %v36 = vld [vmem:[%s14 + $0x50] sm:$0xff]
      %37 = vst [vmem:[%s15 + $0x50] sm:$0xff] %v36
      %v38 = vld [vmem:[%s14 + $0x58] sm:$0xff]
      %39 = vst [vmem:[%s15 + $0x58] sm:$0xff] %v38
      %v40 = vld [vmem:[%s14 + $0x60] sm:$0xff]
      %41 = vst [vmem:[%s15 + $0x60] sm:$0xff] %v40
      %v42 = vld [vmem:[%s14 + $0x68] sm:$0xff]
      %43 = vst [vmem:[%s15 + $0x68] sm:$0xff] %v42
      %v44 = vld [vmem:[%s14 + $0x70] sm:$0xff]
      %45 = vst [vmem:[%s15 + $0x70] sm:$0xff] %v44
      %v46 = vld [vmem:[%s14 + $0x78] sm:$0xff]
      %47 = vst [vmem:[%s15 + $0x78] sm:$0xff] %v46
    $region10: #{tpu_custom_call.1} parent=4 // loop_footer
      %s13 = sadd.s32 1, %s9
    $region11: #{tpu_custom_call.1} parent=4 // loop_footer_branch
      %8 = sbr.rel target = $region7
    $region12: #{tpu_custom_call.1} parent=4 // loop_exit
      _
  $region5: #{tpu_custom_call.1} parent=0 // pred_fallthru
    _
  // Predicated region
  $region13: #{tpu_custom_call.1} parent=0 // pred_check
    _
  $region14: #{tpu_custom_call.1} parent=0 // pred_check_branch
    %49 = sbr.rel target = $region16
  $region15: #{tpu_custom_call.1} parent=0 // pred_region
    _
  $region16: #{tpu_custom_call.1} parent=0 // pred_fallthru
    _
  // Predicated region
  $region17: #{tpu_custom_call.1} parent=0 // pred_check
    _
  $region18: #{tpu_custom_call.1} parent=0 // pred_check_branch
    %52 = sbr.rel (0) target = $region20
  $region19: #{tpu_custom_call.1} parent=0 // pred_region
    %53 = vsyncadd [#allocation2], 2048
  $region20: #{tpu_custom_call.1} parent=0 // pred_fallthru
    _
  %s54 = smul.u32 128, 1
  %s55 = sshll.u32 %s54, 4
  %56 = dma.done [#allocation2], %s55
  %57 = vsyncmov [#allocation2]
  %s58 = vpop.sfrf %57
  %p59 = scmp.eq.s32.totalorder %s58, 0
  %p60 = pneg %p59
  %62 = shalt.err (%p60)

</llo_original>
